<compile_context>
chip_gen: v7x
topology: tpu7x:2x2x1
jax: 0.10.0
libtpu: 0.0.40
codegen_flags: <defaults>
</compile_context>

<pallas_src>
import functools

import numpy as np
import jax
import jax.numpy as jnp
from jax.experimental import pallas as pl
from jax.experimental.pallas import tpu as pltpu


# ----------------------------------------------------------------------------
# Config (mirrors the PyTorch config object)
# ----------------------------------------------------------------------------
class Config:
    hiddenSize = 32
    numLayers = 3
    activation = "ELU"


def _round_up(x, m):
    return (x + m - 1) // m * m


def _choose_tiling(batch):
    """Pick (padded_batch, batch_tile).

    Small batches -> one full-batch tile (no padding, one grid step).
    Large batches -> largest 256-multiple tile <= 2048 that keeps >= 2 grid
    steps (megacore-friendly on v7x; multiple of 256 keeps the 2x256 MXU
    output cadence full on v6e/v7x).
    """
    if batch <= 512:
        return batch, batch
    tb = 2048
    while tb > 256 and pl.cdiv(batch, tb) < 2:
        tb //= 2
    bp = _round_up(batch, tb)
    return bp, tb


# ----------------------------------------------------------------------------
# Pallas kernel: fused MLP on one batch tile (batch on lanes after layer 0)
# ----------------------------------------------------------------------------
def _mlp_kernel(x_ref, w_ref, b_ref, out_ref, *, num_layers, act, din, hidden):
    x = x_ref[...].astype(jnp.bfloat16)                     # (tb, din)

    # layer 0:  acc = W0 @ x^T  -> (out0, tb), f32 accumulation on the MXU.
    w0 = w_ref[0][:, :din]                                  # (out0, din) bf16
    acc = jax.lax.dot_general(
        w0, x, (((1,), (1,)), ((), ())),
        preferred_element_type=jnp.float32)
    acc = acc + b_ref[:, 0:1]                               # f32 bias

    for li in range(1, num_layers + 1):
        # activation of the previous (non-final) layer, in f32
        if act == "elu":
            acc = jnp.where(acc > 0, acc,
                            jnp.exp(jnp.minimum(acc, 0.0)) - 1.0)
        else:  # relu
            acc = jnp.maximum(acc, 0.0)
        h = acc.astype(jnp.bfloat16)                        # (hidden, tb)
        w = w_ref[li][:, :hidden]                           # (maxOut, hidden)
        acc = jnp.dot(w, h, preferred_element_type=jnp.float32)
        acc = acc + b_ref[:, li:li + 1]                     # (maxOut, tb)

    logits = acc[0:1, :]                                    # (1, tb) lane-dense
    probs = jax.nn.sigmoid(logits)
    pad = jnp.zeros((out_ref.shape[0] - 2, logits.shape[1]), jnp.float32)
    out_ref[...] = jnp.concatenate([logits, probs, pad], axis=0)


# ----------------------------------------------------------------------------
# Host-side wrappers
# ----------------------------------------------------------------------------
def prepare_params(params, input_size, cfg):
    """One-time packing/cast of all weights and biases into two arrays."""
    nl = cfg.numLayers
    sizes = [input_size] + [cfg.hiddenSize] * nl + [1]
    max_out = max(sizes[1:])
    max_in = max(sizes[:-1])
    w_pack = np.zeros((nl + 1, max_out, max_in), np.float32)
    b_pack = np.zeros((max_out, nl + 1), np.float32)
    for li in range(nl + 1):
        w = np.asarray(params[f"w{li}"], np.float32)
        b = np.asarray(params[f"b{li}"], np.float32)
        w_pack[li, :w.shape[0], :w.shape[1]] = w
        b_pack[:b.shape[0], li] = b
    return jnp.asarray(w_pack, jnp.bfloat16), jnp.asarray(b_pack, jnp.float32)


def continue_forward(prep, x, *, num_layers, act, hidden):
    """x: (B, inputSize) f32 -> (logits (B,), probs (B,)) — Bernoulli params."""
    w_pack, b_pack = prep
    B, din = x.shape
    bp, tb = _choose_tiling(B)
    if bp != B:                           # only on the ragged multi-tile path
        x = jnp.pad(x, ((0, bp - B), (0, 0)))

    out = pl.pallas_call(
        functools.partial(_mlp_kernel, num_layers=num_layers, act=act,
                          din=din, hidden=hidden),
        out_shape=jax.ShapeDtypeStruct((8, bp), jnp.float32),
        grid=(bp // tb,),
        in_specs=[
            pl.BlockSpec((tb, din), lambda i: (i, 0)),        # batch tiled
            pl.BlockSpec(w_pack.shape, lambda i: (0, 0, 0)),  # resident
            pl.BlockSpec(b_pack.shape, lambda i: (0, 0)),     # resident
        ],
        out_specs=pl.BlockSpec((8, tb), lambda i: (0, i)),
        compiler_params=pltpu.CompilerParams(
            dimension_semantics=("parallel",)),
    )(x, w_pack, b_pack)

    # row 0 = logits, row 1 = probs; padded batch columns [B, bp) hold junk
    # and are sliced away here.
    return out[0, :B], out[1, :B]


# ----------------------------------------------------------------------------
# Parameter init (matches nn.Linear layout: weight (out, in), bias (out,))
# ----------------------------------------------------------------------------
def init_params(key, input_size, cfg):
    sizes = [input_size] + [cfg.hiddenSize] * cfg.numLayers + [1]
    keys = jax.random.split(key, 2 * (len(sizes) - 1))
    params = {}
    for li in range(len(sizes) - 1):
        params[f"w{li}"] = (0.1 * jax.random.normal(
            keys[2 * li], (sizes[li + 1], sizes[li]))).astype(jnp.float32)
        params[f"b{li}"] = (0.1 * jax.random.normal(
            keys[2 * li + 1], (sizes[li + 1],))).astype(jnp.float32)
    return params


# ----------------------------------------------------------------------------
# Independent NumPy reference
# ----------------------------------------------------------------------------
def continue_ref(params, x, cfg):
    act = cfg.activation.lower()
    h = np.asarray(x, np.float64)
    for li in range(cfg.numLayers + 1):
        w = np.asarray(params[f"w{li}"], np.float64)
        b = np.asarray(params[f"b{li}"], np.float64)
        h = h @ w.T + b
        if li < cfg.numLayers:
            if act == "elu":
                h = np.where(h > 0, h, np.exp(np.minimum(h, 0.0)) - 1.0)
            else:
                h = np.maximum(h, 0.0)
    logits = h[:, 0]
    probs = 1.0 / (1.0 + np.exp(-logits))
    return logits, probs


# ----------------------------------------------------------------------------
if __name__ == "__main__":
    cfg = Config()
    input_size = 32

    key = jax.random.PRNGKey(0)
    k_param, k_x1, k_x2, k_x3 = jax.random.split(key, 4)

    params = init_params(k_param, input_size, cfg)
    prep = prepare_params(params, input_size, cfg)

    act = "elu" if cfg.activation.lower() == "elu" else "relu"
    fwd = functools.partial(continue_forward, num_layers=cfg.numLayers,
                            act=act, hidden=cfg.hiddenSize)

    # batch=2 and batch=300: single full-batch tile (grid=(1,), no padding);
    # batch=1100: multi-tile path (tb=1024, grid=(2,), ragged edge padded).
    for k_x, batch in ((k_x1, 2), (k_x2, 300), (k_x3, 1100)):
        x = jax.random.normal(k_x, (batch, input_size), dtype=jnp.float32)

        logits, probs = fwd(prep, x)
        logits = jax.block_until_ready(logits)
        probs = jax.block_until_ready(probs)

        assert logits.shape == (batch,), logits.shape
        assert probs.shape == (batch,), probs.shape

        ref_logits, ref_probs = continue_ref(params, np.asarray(x), cfg)
        np.testing.assert_allclose(np.asarray(logits), ref_logits,
                                   rtol=2e-2, atol=2e-2)
        np.testing.assert_allclose(np.asarray(probs), ref_probs,
                                   rtol=2e-2, atol=2e-2)

    # TODO(synk): torch.distributions.Bernoulli methods (sample/log_prob) are
    # not part of the forward compute; the kernel returns logits and probs.
    print("KERNEL_OK")
</pallas_src>

<mosaic_0001>
module attributes {stable_mosaic.version = 11 : i64} {
  func.func @_mlp_kernel(%arg0: i32, %arg1: memref<2x32xf32, #tpu.memory_space<vmem>>, %arg2: memref<4x32x32xbf16, #tpu.memory_space<vmem>>, %arg3: memref<32x4xf32, #tpu.memory_space<vmem>>, %arg4: memref<8x2xf32, #tpu.memory_space<vmem>>) attributes {dimension_semantics = [#tpu.dimension_semantics<parallel>], iteration_bounds = array<i64: 1>, scalar_prefetch = 0 : i64, scratch_operands = 0 : i64, tpu.core_type = #tpu.core_type<tc>, window_params = [{transform_indices = @transform_0, window_bounds = array<i64: 2, 32>}, {pipeline_mode = #tpu.pipeline_mode<synchronous>, transform_indices = @transform_1, window_bounds = array<i64: 4, 32, 32>}, {pipeline_mode = #tpu.pipeline_mode<synchronous>, transform_indices = @transform_2, window_bounds = array<i64: 32, 4>}, {transform_indices = @transform_3, window_bounds = array<i64: 8, 2>}]} {
    %c0 = arith.constant 0 : index
    %c0_0 = arith.constant 0 : index
    %0 = vector.load %arg1[%c0, %c0_0] : memref<2x32xf32, #tpu.memory_space<vmem>>, vector<2x32xf32>
    %1 = arith.truncf %0 : vector<2x32xf32> to vector<2x32xbf16>
    %c0_1 = arith.constant 0 : index
    %c0_2 = arith.constant 0 : index
    %c0_3 = arith.constant 0 : index
    %2 = vector.load %arg2[%c0_1, %c0_2, %c0_3] : memref<4x32x32xbf16, #tpu.memory_space<vmem>>, vector<1x32x32xbf16>
    %3 = vector.shape_cast %2 : vector<1x32x32xbf16> to vector<32x32xbf16>
    %cst = arith.constant dense<0.000000e+00> : vector<32x2xf32>
    %4 = tpu.matmul %3, %1, %cst {dimension_numbers = #tpu.dot_dimension_numbers<[1], [1], [0], [0], [0, 0, 1, 0], [], []>} : vector<32x32xbf16>, vector<2x32xbf16>, vector<32x2xf32> -> vector<32x2xf32>
    %c0_4 = arith.constant 0 : index
    %c0_5 = arith.constant 0 : index
    %5 = vector.load %arg3[%c0_4, %c0_5] : memref<32x4xf32, #tpu.memory_space<vmem>>, vector<32x1xf32>
    %6 = vector.broadcast %5 : vector<32x1xf32> to vector<32x2xf32>
    %7 = arith.addf %4, %6 : vector<32x2xf32>
    %cst_6 = arith.constant 0.000000e+00 : f32
    %8 = vector.broadcast %cst_6 : f32 to vector<32x2xf32>
    %9 = arith.cmpf ogt, %7, %8 : vector<32x2xf32>
    %cst_7 = arith.constant 0.000000e+00 : f32
    %10 = vector.broadcast %cst_7 : f32 to vector<32x2xf32>
    %11 = arith.minimumf %7, %10 : vector<32x2xf32>
    %12 = math.exp %11 : vector<32x2xf32>
    %cst_8 = arith.constant 1.000000e+00 : f32
    %13 = vector.broadcast %cst_8 : f32 to vector<32x2xf32>
    %14 = arith.subf %12, %13 : vector<32x2xf32>
    %15 = arith.select %9, %7, %14 : vector<32x2xi1>, vector<32x2xf32>
    %16 = arith.truncf %15 : vector<32x2xf32> to vector<32x2xbf16>
    %c1 = arith.constant 1 : index
    %c0_9 = arith.constant 0 : index
    %c0_10 = arith.constant 0 : index
    %17 = vector.load %arg2[%c1, %c0_9, %c0_10] : memref<4x32x32xbf16, #tpu.memory_space<vmem>>, vector<1x32x32xbf16>
    %18 = vector.shape_cast %17 : vector<1x32x32xbf16> to vector<32x32xbf16>
    %cst_11 = arith.constant dense<0.000000e+00> : vector<32x2xf32>
    %19 = tpu.matmul %18, %16, %cst_11 {dimension_numbers = #tpu.dot_dimension_numbers<[1], [0], [0], [1], [0, 0, 1, 1], [], []>} : vector<32x32xbf16>, vector<32x2xbf16>, vector<32x2xf32> -> vector<32x2xf32>
    %c0_12 = arith.constant 0 : index
    %c1_13 = arith.constant 1 : index
    %20 = vector.load %arg3[%c0_12, %c1_13] : memref<32x4xf32, #tpu.memory_space<vmem>>, vector<32x1xf32>
    %21 = vector.broadcast %20 : vector<32x1xf32> to vector<32x2xf32>
    %22 = arith.addf %19, %21 : vector<32x2xf32>
    %cst_14 = arith.constant 0.000000e+00 : f32
    %23 = vector.broadcast %cst_14 : f32 to vector<32x2xf32>
    %24 = arith.cmpf ogt, %22, %23 : vector<32x2xf32>
    %cst_15 = arith.constant 0.000000e+00 : f32
    %25 = vector.broadcast %cst_15 : f32 to vector<32x2xf32>
    %26 = arith.minimumf %22, %25 : vector<32x2xf32>
    %27 = math.exp %26 : vector<32x2xf32>
    %cst_16 = arith.constant 1.000000e+00 : f32
    %28 = vector.broadcast %cst_16 : f32 to vector<32x2xf32>
    %29 = arith.subf %27, %28 : vector<32x2xf32>
    %30 = arith.select %24, %22, %29 : vector<32x2xi1>, vector<32x2xf32>
    %31 = arith.truncf %30 : vector<32x2xf32> to vector<32x2xbf16>
    %c2 = arith.constant 2 : index
    %c0_17 = arith.constant 0 : index
    %c0_18 = arith.constant 0 : index
    %32 = vector.load %arg2[%c2, %c0_17, %c0_18] : memref<4x32x32xbf16, #tpu.memory_space<vmem>>, vector<1x32x32xbf16>
    %33 = vector.shape_cast %32 : vector<1x32x32xbf16> to vector<32x32xbf16>
    %cst_19 = arith.constant dense<0.000000e+00> : vector<32x2xf32>
    %34 = tpu.matmul %33, %31, %cst_19 {dimension_numbers = #tpu.dot_dimension_numbers<[1], [0], [0], [1], [0, 0, 1, 1], [], []>} : vector<32x32xbf16>, vector<32x2xbf16>, vector<32x2xf32> -> vector<32x2xf32>
    %c0_20 = arith.constant 0 : index
    %c2_21 = arith.constant 2 : index
    %35 = vector.load %arg3[%c0_20, %c2_21] : memref<32x4xf32, #tpu.memory_space<vmem>>, vector<32x1xf32>
    %36 = vector.broadcast %35 : vector<32x1xf32> to vector<32x2xf32>
    %37 = arith.addf %34, %36 : vector<32x2xf32>
    %cst_22 = arith.constant 0.000000e+00 : f32
    %38 = vector.broadcast %cst_22 : f32 to vector<32x2xf32>
    %39 = arith.cmpf ogt, %37, %38 : vector<32x2xf32>
    %cst_23 = arith.constant 0.000000e+00 : f32
    %40 = vector.broadcast %cst_23 : f32 to vector<32x2xf32>
    %41 = arith.minimumf %37, %40 : vector<32x2xf32>
    %42 = math.exp %41 : vector<32x2xf32>
    %cst_24 = arith.constant 1.000000e+00 : f32
    %43 = vector.broadcast %cst_24 : f32 to vector<32x2xf32>
    %44 = arith.subf %42, %43 : vector<32x2xf32>
    %45 = arith.select %39, %37, %44 : vector<32x2xi1>, vector<32x2xf32>
    %46 = arith.truncf %45 : vector<32x2xf32> to vector<32x2xbf16>
    %c3 = arith.constant 3 : index
    %c0_25 = arith.constant 0 : index
    %c0_26 = arith.constant 0 : index
    %47 = vector.load %arg2[%c3, %c0_25, %c0_26] : memref<4x32x32xbf16, #tpu.memory_space<vmem>>, vector<1x32x32xbf16>
    %48 = vector.shape_cast %47 : vector<1x32x32xbf16> to vector<32x32xbf16>
    %cst_27 = arith.constant dense<0.000000e+00> : vector<32x2xf32>
    %49 = tpu.matmul %48, %46, %cst_27 {dimension_numbers = #tpu.dot_dimension_numbers<[1], [0], [0], [1], [0, 0, 1, 1], [], []>} : vector<32x32xbf16>, vector<32x2xbf16>, vector<32x2xf32> -> vector<32x2xf32>
    %c0_28 = arith.constant 0 : index
    %c3_29 = arith.constant 3 : index
    %50 = vector.load %arg3[%c0_28, %c3_29] : memref<32x4xf32, #tpu.memory_space<vmem>>, vector<32x1xf32>
    %51 = vector.broadcast %50 : vector<32x1xf32> to vector<32x2xf32>
    %52 = arith.addf %49, %51 : vector<32x2xf32>
    %53 = vector.extract_strided_slice %52 {offsets = [0, 0], sizes = [1, 2], strides = [1, 1]} : vector<32x2xf32> to vector<1x2xf32>
    %54 = arith.negf %53 : vector<1x2xf32>
    %55 = math.exp %54 : vector<1x2xf32>
    %cst_30 = arith.constant 1.000000e+00 : f32
    %56 = vector.broadcast %cst_30 : f32 to vector<1x2xf32>
    %57 = arith.addf %56, %55 : vector<1x2xf32>
    %58 = arith.divf %56, %57 : vector<1x2xf32>
    %cst_31 = arith.constant 0.000000e+00 : f32
    %59 = vector.broadcast %cst_31 : f32 to vector<6x2xf32>
    %60 = tpu.concatenate %53, %58, %59 in 0 : vector<1x2xf32>, vector<1x2xf32>, vector<6x2xf32> -> vector<8x2xf32>
    %c0_32 = arith.constant 0 : index
    %c0_33 = arith.constant 0 : index
    %61 = vector.load %arg4[%c0_32, %c0_33] : memref<8x2xf32, #tpu.memory_space<vmem>>, vector<8x2xf32>
    tpu.vector_store %arg4[%c0_32, %c0_33], %60 {strides = array<i32>} : memref<8x2xf32, #tpu.memory_space<vmem>>, vector<8x2xf32>,
    return
  }
  func.func @transform_0(%arg0: i32) -> (i32, i32) {
    %c0_i32 = arith.constant 0 : i32
    %c0_i32_0 = arith.constant 0 : i32
    return %arg0, %c0_i32 : i32, i32
  }
  func.func @transform_1(%arg0: i32) -> (i32, i32, i32) {
    %c0_i32 = arith.constant 0 : i32
    %c0_i32_0 = arith.constant 0 : i32
    %c0_i32_1 = arith.constant 0 : i32
    %c0_i32_2 = arith.constant 0 : i32
    return %c0_i32, %c0_i32_0, %c0_i32_1 : i32, i32, i32
  }
  func.func @transform_2(%arg0: i32) -> (i32, i32) {
    %c0_i32 = arith.constant 0 : i32
    %c0_i32_0 = arith.constant 0 : i32
    %c0_i32_1 = arith.constant 0 : i32
    return %c0_i32, %c0_i32_0 : i32, i32
  }
  func.func @transform_3(%arg0: i32) -> (i32, i32) {
    %c0_i32 = arith.constant 0 : i32
    %c0_i32_0 = arith.constant 0 : i32
    return %c0_i32, %arg0 : i32, i32
  }
}

</mosaic_0001>

<llo_original>
// kernel: tpu_custom_call.1
$region0: #{tpu_custom_call.1}
  #allocation0 [shape = 'u32[]', space=smem, size = 0x4, offset = 0x4, fixed_abs, tag = 'smem constant byte address 0x4 - core index']
  #allocation1 [shape = 'u32[144,128]{1,0:T(1,128)}', space=vmem, size = 0x12000, scoped, tag = 'internal scratch']
  %s0 = inlined_call_operand.vmem [shape: f32[2,32], index: 0, kind: input, shape index: {}]
  %s1 = inlined_call_operand.hbm [shape: bf16[4,32,32], index: 1, kind: input, shape index: {}]
  %s2 = inlined_call_operand.vmem [shape: f32[32,4], index: 2, kind: input, shape index: {}]
  %s3 = inlined_call_operand.vmem [shape: f32[8,2], index: 3, kind: output, shape index: {}]
  %s4 = sld [smem:[#allocation0]]
  $region26: #{tpu_custom_call.1} parent=0
    _
  %s6 = ssub.s32 1, %s4
  %s7 = scalar_select 0, %s6, %s4
  $region1: #{tpu_custom_call.1} parent=0
    #allocation2 [shape = 'u8[32768]{0}', space=vmem, size = 0x8000, scoped, tag = 'input window, operand 1, single buffered']
    #allocation3 [shape = 's32[1]{0}', space=sflag, size = 0x4, scoped, tag = 'scoped memory for tpu_custom_call.1']
    %8 = vsyncpa [#allocation3], 0
    // Predicated region
    $region2: #{tpu_custom_call.1} parent=1 // pred_check
      _
    $region3: #{tpu_custom_call.1} parent=1 // pred_check_branch
      %10 = sbr.rel (0) target = $region5
    $region4: #{tpu_custom_call.1} parent=1 // pred_region
      _
    $region5: #{tpu_custom_call.1} parent=1 // pred_fallthru
      _
    // Predicated region
    $region6: #{tpu_custom_call.1} parent=1 // pred_check
      _
    $region7: #{tpu_custom_call.1} parent=1 // pred_check_branch
      %12 = sbr.rel (0) target = $region9
    $region8: #{tpu_custom_call.1} parent=1 // pred_region
      %s14 = ssub.s32 1024, 1024
      %15 = vsyncadd [#allocation3], %s14
      %s16 = sshll.u32 [#allocation2], 4
      %s17 = int_to_ptr.vmem [resolvable:$true] %s16
      %22 = dma.hbm_to_vmem [thread:$0]  %s1, 1024, %s17, [#allocation3], 64, 64, 4
    $region9: #{tpu_custom_call.1} parent=1 // pred_fallthru
      _
    // Predicated region
    $region10: #{tpu_custom_call.1} parent=1 // pred_check
      _
    $region11: #{tpu_custom_call.1} parent=1 // pred_check_branch
      %24 = sbr.rel (0) target = $region13
    $region12: #{tpu_custom_call.1} parent=1 // pred_region
      _
    $region13: #{tpu_custom_call.1} parent=1 // pred_fallthru
      _
    // Predicated region
    $region14: #{tpu_custom_call.1} parent=1 // pred_check
      _
    $region15: #{tpu_custom_call.1} parent=1 // pred_check_branch
      %26 = sbr.rel (0) target = $region17
    $region16: #{tpu_custom_call.1} parent=1 // pred_region
      %27 = dma.done [#allocation3], 1024
    $region17: #{tpu_custom_call.1} parent=1 // pred_fallthru
      _
    %v29 = vld [vmem:[%s0] sm:$0x3]
    %v30 = vpack.c.bf16 %v29, %v29
    %v31 = vld [vmem:[#allocation2] sm:$0xf]
    %v32 = vld [vmem:[#allocation2 + $0x4] sm:$0xf]
    %v33 = vld [vmem:[#allocation2 + $0x8] sm:$0xf]
    %v34 = vld [vmem:[#allocation2 + $0xc] sm:$0xf]
    %v35 = vld [vmem:[%s2] sm:$0xff]
    %v36 = vld [vmem:[%s2 + $0x8] sm:$0xff]
    %v37 = vld [vmem:[%s2 + $0x10] sm:$0xff]
    %v38 = vld [vmem:[%s2 + $0x18] sm:$0xff]
    %40 = vset.pattern.permute.xlu0 0
    %41 = vperm.xlu0 %40, %v35
    %v42 = vpop.permute.xlu0 %41
    %45 = vset.pattern.permute.xlu0 0
    %46 = vperm.xlu0 %45, %v36
    %v47 = vpop.permute.xlu0 %46
    %50 = vset.pattern.permute.xlu0 0
    %51 = vperm.xlu0 %50, %v37
    %v52 = vpop.permute.xlu0 %51
    %55 = vset.pattern.permute.xlu0 0
    %56 = vperm.xlu0 %55, %v38
    %v57 = vpop.permute.xlu0 %56
    %v63 = vunpack.c.l.b16 %v31
    %v64 = vunpack.c.l.b16 %v32
    %v65 = vunpack.c.l.b16 %v33
    %v66 = vunpack.c.l.b16 %v34
    %v67 = vpack.c.b16 %v64, %v63
    %v68 = vpack.c.b16 %v66, %v65
    %vm69 = vcmask 261120
    %v71 = vsel %vm69, %v67, 0
    %v74 = vsel %vm69, %v68, 0
    %v77 = vsel %vm69, %v30, 0
    %79 = vmatprep.subr.bf16.mxu0 0
    %80 = vmatpush1.bf16.xpose.msra.mxu0 %v77
    %81 = vmatprep.subr.bf16.mxu0 0
    %82 = vmatpush1.bf16.xpose.msra.mxu0 0
    %83 = vmatprep.subr.bf16.mxu0 0
    %84 = vmatpush1.bf16.xpose.msra.mxu0 0
    %85 = vmatprep.subr.bf16.mxu0 0
    %86 = vmatpush1.bf16.xpose.msra.mxu0 0
    %87 = vmatprep.subr.bf16.mxu0 0
    %88 = vmatpush1.bf16.xpose.msra.mxu0 0
    %89 = vmatprep.subr.bf16.mxu0 0
    %90 = vmatpush1.bf16.xpose.msra.mxu0 0
    %91 = vmatprep.subr.bf16.mxu0 0
    %92 = vmatpush1.bf16.xpose.msra.mxu0 0
    %93 = vmatprep.subr.bf16.mxu0 0
    %94 = vmatpush1.bf16.xpose.msra.mxu0 0
    %95 = vmatprep.subr.bf16.mxu0 0
    %96 = vmatpush1.bf16.xpose.msra.mxu0 0
    %97 = vmatprep.subr.bf16.mxu0 0
    %98 = vmatpush1.bf16.xpose.msra.mxu0 0
    %99 = vmatprep.subr.bf16.mxu0 0
    %100 = vmatpush1.bf16.xpose.msra.mxu0 0
    %101 = vmatprep.subr.bf16.mxu0 0
    %102 = vmatpush1.bf16.xpose.msra.mxu0 0
    %103 = vmatprep.subr.bf16.mxu0 0
    %104 = vmatpush1.bf16.xpose.msra.mxu0 0
    %105 = vmatprep.subr.bf16.mxu0 0
    %106 = vmatpush1.bf16.xpose.msra.mxu0 0
    %107 = vmatprep.subr.bf16.mxu0 0
    %108 = vmatpush1.bf16.xpose.msra.mxu0 0
    %109 = vmatprep.subr.bf16.mxu0 0
    %110 = vmatpush1.bf16.xpose.msra.mxu0 0
    %111 = vmatprep.mubr.bf16.mxu0 0
    %112 = vmatmul.mubr.bf16.gmra.mrb[0].mxu0 %v71
    %v113 = vpop.f32.mrb[0].mxu0
    %v114 = vadd.f32 %v42, %v113
    %v115 = vpop.f32.mrb[0].mxu0
    %v116 = vpop.f32.mrb[0].mxu0
    %v117 = vadd.f32 %v47, %v116
    %v118 = vpop.f32.mrb[0].mxu0
    %119 = vmatprep.mubr.bf16.mxu0 0
    %120 = vmatmul.mubr.bf16.gmra.mrb[0].mxu0 %v74
    %v121 = vpop.f32.mrb[0].mxu0
    %v122 = vadd.f32 %v52, %v121
    %v123 = vpop.f32.mrb[0].mxu0
    %v124 = vpop.f32.mrb[0].mxu0
    %v125 = vadd.f32 %v57, %v124
    %v126 = vpop.f32.mrb[0].mxu0
    %127 = vdwg.mxu0
    %vm128 = vcmp.gt.f32.partialorder %v114, 0.0
    %vm129 = vcmp.gt.f32.partialorder %v117, 0.0
    %vm130 = vcmp.gt.f32.partialorder %v122, 0.0
    %vm131 = vcmp.gt.f32.partialorder %v125, 0.0
    %v132 = vmin.f32 %v114, 0.0
    %v133 = vmin.f32 %v117, 0.0
    %v134 = vmin.f32 %v122, 0.0
    %v135 = vmin.f32 %v125, 0.0
    %v136 = vmul.f32 %v132, 1.442695
    %v137 = vpow.pop %v136
    %v138 = vmul.f32 %v133, 1.442695
    %v139 = vpow.pop %v138
    %v140 = vmul.f32 %v134, 1.442695
    %v141 = vpow.pop %v140
    %v142 = vmul.f32 %v135, 1.442695
    %v143 = vpow.pop %v142
    %v144 = vsub.f32 %v137, 1.0
    %v145 = vsub.f32 %v139, 1.0
    %v146 = vsub.f32 %v141, 1.0
    %v147 = vsub.f32 %v143, 1.0
    %v148 = vsel %vm128, %v114, %v144
    %v149 = vsel %vm129, %v117, %v145
    %v150 = vsel %vm130, %v122, %v146
    %v151 = vsel %vm131, %v125, %v147
    %v152 = vpack.c.bf16 %v149, %v148
    %v153 = vpack.c.bf16 %v151, %v150
    %s154 = scalar_lea.vmem [#allocation2], 16
    %v155 = vld [vmem:[%s154] sm:$0xf]
    %v156 = vld [vmem:[%s154 + $0x4] sm:$0xf]
    %v157 = vld [vmem:[%s154 + $0x8] sm:$0xf]
    %v158 = vld [vmem:[%s154 + $0xc] sm:$0xf]
    %159 = vset.pattern.permute.xlu0 1
    %160 = vperm.xlu0 %159, %v35
    %v161 = vpop.permute.xlu0 %160
    %163 = vset.pattern.permute.xlu0 1
    %164 = vperm.xlu0 %163, %v36
    %v165 = vpop.permute.xlu0 %164
    %167 = vset.pattern.permute.xlu0 1
    %168 = vperm.xlu0 %167, %v37
    %v169 = vpop.permute.xlu0 %168
    %171 = vset.pattern.permute.xlu0 1
    %172 = vperm.xlu0 %171, %v38
    %v173 = vpop.permute.xlu0 %172
    %v179 = vunpack.c.l.b16 %v155
    %v180 = vunpack.c.l.b16 %v156
    %v181 = vunpack.c.l.b16 %v157
    %v182 = vunpack.c.l.b16 %v158
    %v183 = vpack.c.b16 %v180, %v179
    %v184 = vpack.c.b16 %v182, %v181
    %v186 = vsel %vm69, %v183, 0
    %v189 = vsel %vm69, %v184, 0
    %191 = vmatprep.subr.bf16.mxu0 0
    %192 = vmatpush1.bf16.msra.mxu0 %v152
    %193 = vmatprep.subr.bf16.mxu0 0
    %194 = vmatpush1.bf16.msra.mxu0 %v153
    %195 = vmatprep.subr.bf16.mxu0 0
    %196 = vmatpush1.bf16.msra.mxu0 0
    %197 = vmatprep.subr.bf16.mxu0 0
    %198 = vmatpush1.bf16.msra.mxu0 0
    %199 = vmatprep.subr.bf16.mxu0 0
    %200 = vmatpush1.bf16.msra.mxu0 0
    %201 = vmatprep.subr.bf16.mxu0 0
    %202 = vmatpush1.bf16.msra.mxu0 0
    %203 = vmatprep.subr.bf16.mxu0 0
    %204 = vmatpush1.bf16.msra.mxu0 0
    %205 = vmatprep.subr.bf16.mxu0 0
    %206 = vmatpush1.bf16.msra.mxu0 0
    %207 = vmatprep.subr.bf16.mxu0 0
    %208 = vmatpush1.bf16.msra.mxu0 0
    %209 = vmatprep.subr.bf16.mxu0 0
    %210 = vmatpush1.bf16.msra.mxu0 0
    %211 = vmatprep.subr.bf16.mxu0 0
    %212 = vmatpush1.bf16.msra.mxu0 0
    %213 = vmatprep.subr.bf16.mxu0 0
    %214 = vmatpush1.bf16.msra.mxu0 0
    %215 = vmatprep.subr.bf16.mxu0 0
    %216 = vmatpush1.bf16.msra.mxu0 0
    %217 = vmatprep.subr.bf16.mxu0 0
    %218 = vmatpush1.bf16.msra.mxu0 0
    %219 = vmatprep.subr.bf16.mxu0 0
    %220 = vmatpush1.bf16.msra.mxu0 0
    %221 = vmatprep.subr.bf16.mxu0 0
    %222 = vmatpush1.bf16.msra.mxu0 0
    %223 = vmatprep.mubr.bf16.mxu0 0
    %224 = vmatmul.mubr.bf16.gmra.mrb[0].mxu0 %v186
    %v225 = vpop.f32.mrb[0].mxu0
    %v226 = vadd.f32 %v161, %v225
    %v227 = vpop.f32.mrb[0].mxu0
    %v228 = vpop.f32.mrb[0].mxu0
    %v229 = vadd.f32 %v165, %v228
    %v230 = vpop.f32.mrb[0].mxu0
    %231 = vmatprep.mubr.bf16.mxu0 0
    %232 = vmatmul.mubr.bf16.gmra.mrb[0].mxu0 %v189
    %v233 = vpop.f32.mrb[0].mxu0
    %v234 = vadd.f32 %v169, %v233
    %v235 = vpop.f32.mrb[0].mxu0
    %v236 = vpop.f32.mrb[0].mxu0
    %v237 = vadd.f32 %v173, %v236
    %v238 = vpop.f32.mrb[0].mxu0
    %239 = vdwg.mxu0
    %vm240 = vcmp.gt.f32.partialorder %v226, 0.0
    %vm241 = vcmp.gt.f32.partialorder %v229, 0.0
    %vm242 = vcmp.gt.f32.partialorder %v234, 0.0
    %vm243 = vcmp.gt.f32.partialorder %v237, 0.0
    %v244 = vmin.f32 %v226, 0.0
    %v245 = vmin.f32 %v229, 0.0
    %v246 = vmin.f32 %v234, 0.0
    %v247 = vmin.f32 %v237, 0.0
    %v248 = vmul.f32 %v244, 1.442695
    %v249 = vpow.pop %v248
    %v250 = vmul.f32 %v245, 1.442695
    %v251 = vpow.pop %v250
    %v252 = vmul.f32 %v246, 1.442695
    %v253 = vpow.pop %v252
    %v254 = vmul.f32 %v247, 1.442695
    %v255 = vpow.pop %v254
    %v256 = vsub.f32 %v249, 1.0
    %v257 = vsub.f32 %v251, 1.0
    %v258 = vsub.f32 %v253, 1.0
    %v259 = vsub.f32 %v255, 1.0
    %v260 = vsel %vm240, %v226, %v256
    %v261 = vsel %vm241, %v229, %v257
    %v262 = vsel %vm242, %v234, %v258
    %v263 = vsel %vm243, %v237, %v259
    %v264 = vpack.c.bf16 %v261, %v260
    %v265 = vpack.c.bf16 %v263, %v262
    %s266 = scalar_lea.vmem [#allocation2], 32
    %v267 = vld [vmem:[%s266] sm:$0xf]
    %v268 = vld [vmem:[%s266 + $0x4] sm:$0xf]
    %v269 = vld [vmem:[%s266 + $0x8] sm:$0xf]
    %v270 = vld [vmem:[%s266 + $0xc] sm:$0xf]
    %271 = vset.pattern.permute.xlu0 2
    %272 = vperm.xlu0 %271, %v35
    %v273 = vpop.permute.xlu0 %272
    %275 = vset.pattern.permute.xlu0 2
    %276 = vperm.xlu0 %275, %v36
    %v277 = vpop.permute.xlu0 %276
    %279 = vset.pattern.permute.xlu0 2
    %280 = vperm.xlu0 %279, %v37
    %v281 = vpop.permute.xlu0 %280
    %283 = vset.pattern.permute.xlu0 2
    %284 = vperm.xlu0 %283, %v38
    %v285 = vpop.permute.xlu0 %284
    %v291 = vunpack.c.l.b16 %v267
    %v292 = vunpack.c.l.b16 %v268
    %v293 = vunpack.c.l.b16 %v269
    %v294 = vunpack.c.l.b16 %v270
    %v295 = vpack.c.b16 %v292, %v291
    %v296 = vpack.c.b16 %v294, %v293
    %v298 = vsel %vm69, %v295, 0
    %v301 = vsel %vm69, %v296, 0
    %303 = vmatprep.subr.bf16.mxu0 0
    %304 = vmatpush1.bf16.msra.mxu0 %v264
    %305 = vmatprep.subr.bf16.mxu0 0
    %306 = vmatpush1.bf16.msra.mxu0 %v265
    %307 = vmatprep.subr.bf16.mxu0 0
    %308 = vmatpush1.bf16.msra.mxu0 0
    %309 = vmatprep.subr.bf16.mxu0 0
    %310 = vmatpush1.bf16.msra.mxu0 0
    %311 = vmatprep.subr.bf16.mxu0 0
    %312 = vmatpush1.bf16.msra.mxu0 0
    %313 = vmatprep.subr.bf16.mxu0 0
    %314 = vmatpush1.bf16.msra.mxu0 0
    %315 = vmatprep.subr.bf16.mxu0 0
    %316 = vmatpush1.bf16.msra.mxu0 0
    %317 = vmatprep.subr.bf16.mxu0 0
    %318 = vmatpush1.bf16.msra.mxu0 0
    %319 = vmatprep.subr.bf16.mxu0 0
    %320 = vmatpush1.bf16.msra.mxu0 0
    %321 = vmatprep.subr.bf16.mxu0 0
    %322 = vmatpush1.bf16.msra.mxu0 0
    %323 = vmatprep.subr.bf16.mxu0 0
    %324 = vmatpush1.bf16.msra.mxu0 0
    %325 = vmatprep.subr.bf16.mxu0 0
    %326 = vmatpush1.bf16.msra.mxu0 0
    %327 = vmatprep.subr.bf16.mxu0 0
    %328 = vmatpush1.bf16.msra.mxu0 0
    %329 = vmatprep.subr.bf16.mxu0 0
    %330 = vmatpush1.bf16.msra.mxu0 0
    %331 = vmatprep.subr.bf16.mxu0 0
    %332 = vmatpush1.bf16.msra.mxu0 0
    %333 = vmatprep.subr.bf16.mxu0 0
    %334 = vmatpush1.bf16.msra.mxu0 0
    %335 = vmatprep.mubr.bf16.mxu0 0
    %336 = vmatmul.mubr.bf16.gmra.mrb[0].mxu0 %v298
    %v337 = vpop.f32.mrb[0].mxu0
    %v338 = vadd.f32 %v273, %v337
    %v339 = vpop.f32.mrb[0].mxu0
    %v340 = vpop.f32.mrb[0].mxu0
    %v341 = vadd.f32 %v277, %v340
    %v342 = vpop.f32.mrb[0].mxu0
    %343 = vmatprep.mubr.bf16.mxu0 0
    %344 = vmatmul.mubr.bf16.gmra.mrb[0].mxu0 %v301
    %v345 = vpop.f32.mrb[0].mxu0
    %v346 = vadd.f32 %v281, %v345
    %v347 = vpop.f32.mrb[0].mxu0
    %v348 = vpop.f32.mrb[0].mxu0
    %v349 = vadd.f32 %v285, %v348
    %v350 = vpop.f32.mrb[0].mxu0
    %351 = vdwg.mxu0
    %vm352 = vcmp.gt.f32.partialorder %v338, 0.0
    %vm353 = vcmp.gt.f32.partialorder %v341, 0.0
    %vm354 = vcmp.gt.f32.partialorder %v346, 0.0
    %vm355 = vcmp.gt.f32.partialorder %v349, 0.0
    %v356 = vmin.f32 %v338, 0.0
    %v357 = vmin.f32 %v341, 0.0
    %v358 = vmin.f32 %v346, 0.0
    %v359 = vmin.f32 %v349, 0.0
    %v360 = vmul.f32 %v356, 1.442695
    %v361 = vpow.pop %v360
    %v362 = vmul.f32 %v357, 1.442695
    %v363 = vpow.pop %v362
    %v364 = vmul.f32 %v358, 1.442695
    %v365 = vpow.pop %v364
    %v366 = vmul.f32 %v359, 1.442695
    %v367 = vpow.pop %v366
    %v368 = vsub.f32 %v361, 1.0
    %v369 = vsub.f32 %v363, 1.0
    %v370 = vsub.f32 %v365, 1.0
    %v371 = vsub.f32 %v367, 1.0
    %v372 = vsel %vm352, %v338, %v368
    %v373 = vsel %vm353, %v341, %v369
    %v374 = vsel %vm354, %v346, %v370
    %v375 = vsel %vm355, %v349, %v371
    %v376 = vpack.c.bf16 %v373, %v372
    %v377 = vpack.c.bf16 %v375, %v374
    %s378 = scalar_lea.vmem [#allocation2], 48
    %v379 = vld [vmem:[%s378] sm:$0xf]
    %v380 = vld [vmem:[%s378 + $0x4] sm:$0xf]
    %v381 = vld [vmem:[%s378 + $0x8] sm:$0xf]
    %v382 = vld [vmem:[%s378 + $0xc] sm:$0xf]
    %383 = vset.pattern.permute.xlu0 3
    %384 = vperm.xlu0 %383, %v35
    %v385 = vpop.permute.xlu0 %384
    %387 = vset.pattern.permute.xlu0 3
    %388 = vperm.xlu0 %387, %v36
    %v389 = vpop.permute.xlu0 %388
    %390 = vset.pattern.permute.xlu0 3
    %391 = vperm.xlu0 %390, %v37
    %v392 = vpop.permute.xlu0 %391
    %393 = vset.pattern.permute.xlu0 3
    %394 = vperm.xlu0 %393, %v38
    %v395 = vpop.permute.xlu0 %394
    %v400 = vunpack.c.l.b16 %v379
    %v401 = vunpack.c.l.b16 %v380
    %v402 = vunpack.c.l.b16 %v381
    %v403 = vunpack.c.l.b16 %v382
    %v404 = vpack.c.b16 %v401, %v400
    %v405 = vpack.c.b16 %v403, %v402
    %v407 = vsel %vm69, %v404, 0
    %v410 = vsel %vm69, %v405, 0
    %412 = vmatprep.subr.bf16.mxu0 0
    %413 = vmatpush1.bf16.msra.mxu0 %v376
    %414 = vmatprep.subr.bf16.mxu0 0
    %415 = vmatpush1.bf16.msra.mxu0 %v377
    %416 = vmatprep.subr.bf16.mxu0 0
    %417 = vmatpush1.bf16.msra.mxu0 0
    %418 = vmatprep.subr.bf16.mxu0 0
    %419 = vmatpush1.bf16.msra.mxu0 0
    %420 = vmatprep.subr.bf16.mxu0 0
    %421 = vmatpush1.bf16.msra.mxu0 0
    %422 = vmatprep.subr.bf16.mxu0 0
    %423 = vmatpush1.bf16.msra.mxu0 0
    %424 = vmatprep.subr.bf16.mxu0 0
    %425 = vmatpush1.bf16.msra.mxu0 0
    %426 = vmatprep.subr.bf16.mxu0 0
    %427 = vmatpush1.bf16.msra.mxu0 0
    %428 = vmatprep.subr.bf16.mxu0 0
    %429 = vmatpush1.bf16.msra.mxu0 0
    %430 = vmatprep.subr.bf16.mxu0 0
    %431 = vmatpush1.bf16.msra.mxu0 0
    %432 = vmatprep.subr.bf16.mxu0 0
    %433 = vmatpush1.bf16.msra.mxu0 0
    %434 = vmatprep.subr.bf16.mxu0 0
    %435 = vmatpush1.bf16.msra.mxu0 0
    %436 = vmatprep.subr.bf16.mxu0 0
    %437 = vmatpush1.bf16.msra.mxu0 0
    %438 = vmatprep.subr.bf16.mxu0 0
    %439 = vmatpush1.bf16.msra.mxu0 0
    %440 = vmatprep.subr.bf16.mxu0 0
    %441 = vmatpush1.bf16.msra.mxu0 0
    %442 = vmatprep.subr.bf16.mxu0 0
    %443 = vmatpush1.bf16.msra.mxu0 0
    %444 = vmatprep.mubr.bf16.mxu0 0
    %445 = vmatmul.mubr.bf16.gmra.mrb[0].mxu0 %v407
    %v446 = vpop.f32.mrb[0].mxu0
    %v447 = vadd.f32 %v385, %v446
    %v448 = vpop.f32.mrb[0].mxu0
    %v449 = vpop.f32.mrb[0].mxu0
    %v450 = vpop.f32.mrb[0].mxu0
    %451 = vmatprep.mubr.bf16.mxu0 0
    %452 = vmatmul.mubr.bf16.gmra.mrb[0].mxu0 %v410
    %v453 = vpop.f32.mrb[0].mxu0
    %v454 = vpop.f32.mrb[0].mxu0
    %v455 = vpop.f32.mrb[0].mxu0
    %v456 = vpop.f32.mrb[0].mxu0
    %457 = vdwg.mxu0
    %v458 = vxor.u32 %v447, 2147483648
    %v459 = vmul.f32 %v458, 1.442695
    %v460 = vpow.pop %v459
    %v461 = vadd.f32 %v460, 1.0
    %v462 = vrcp.pop %v461
    %v463 = vmul.f32 1.0, %v462
    %v465 = vrot.slane %v463, 7
    %vm467 = vcmask 1040384
    %v468 = vsel %vm467, %v447, %v465
    %vm469 = vcmask 1041408
    %v470 = vsel %vm469, %v468, 0.0
    %vm471 = vcmask 15360
    %472 = vst.msk [vmem:[%s3] sm:$0xff] %vm471, %v470
    // Predicated region
    $region18: #{tpu_custom_call.1} parent=1 // pred_check
      _
    $region19: #{tpu_custom_call.1} parent=1 // pred_check_branch
      %474 = sbr.rel (0) target = $region21
    $region20: #{tpu_custom_call.1} parent=1 // pred_region
      _
    $region21: #{tpu_custom_call.1} parent=1 // pred_fallthru
      _
    // Predicated region
    $region22: #{tpu_custom_call.1} parent=1 // pred_check
      _
    $region23: #{tpu_custom_call.1} parent=1 // pred_check_branch
      %476 = sbr.rel (0) target = $region25
    $region24: #{tpu_custom_call.1} parent=1 // pred_region
      _
    $region25: #{tpu_custom_call.1} parent=1 // pred_fallthru
      _
    %477 = vsyncpa [#allocation3], 1

</llo_original>
